<compile_context>
chip_gen: v5e
topology: v5e:2x2
jax: 0.10.0
libtpu: 0.0.40
codegen_flags: <defaults>
</compile_context>

<pallas_src>
import jax
import jax.numpy as jnp
from jax import lax
from jax.experimental import pallas as pl
from jax.experimental.pallas import tpu as pltpu


def _round_up(x, m):
    return (x + m - 1) // m * m


# --------------------------------------------------------------------------- #
# Kernel
# --------------------------------------------------------------------------- #
def mlp_kernel(x_ref, w0_ref, b0_ref, w1_ref, b1_ref, w2t_ref, b2_ref, o_ref):
    # x arrives f32; cast to bf16 on the VPU (free slot) for the MXU.
    x = x_ref[...].astype(jnp.bfloat16)                       # (TB, F)

    # Layer 0: Linear(F -> H_pad) + ReLU   (Dropout = identity in eval)
    h0 = jnp.dot(x, w0_ref[...], preferred_element_type=jnp.float32)
    h0 = jnp.maximum(h0 + b0_ref[...], 0.0)                   # f32 elementwise

    # Layer 1: Linear(H_pad -> H4_pad) + ReLU   (Dropout = identity in eval)
    h1 = jnp.dot(h0.astype(jnp.bfloat16), w1_ref[...],
                 preferred_element_type=jnp.float32)
    h1 = jnp.maximum(h1 + b1_ref[...], 0.0)

    # Layer 2 computed transposed:  (O_r, H4_pad) . (TB, H4_pad)^T -> (O_r, TB)
    # so the output store is a lane-dense row slab instead of a padded column.
    logits_t = lax.dot_general(
        w2t_ref[...], h1.astype(jnp.bfloat16),
        dimension_numbers=(((1,), (1,)), ((), ())),
        preferred_element_type=jnp.float32)
    logits_t = logits_t + b2_ref[...]

    # Final sigmoid (EUP), f32, lane-dense unmasked store.
    o_ref[...] = jax.nn.sigmoid(logits_t)


# --------------------------------------------------------------------------- #
# Parameter construction / one-time preparation
# --------------------------------------------------------------------------- #
def init_params(key, input_size, hidden_size, output_size):
    """Deterministic init mirroring the Linear layer shapes of the module.

    Layer dims: input_size -> hidden_size -> hidden_size//4 -> output_size.
    Weights are generated in PyTorch [out, in] convention, then transposed
    to [in, out] for the math reference / kernel prep.
    """
    h4 = hidden_size // 4
    dims = [(hidden_size, input_size), (h4, hidden_size), (output_size, h4)]
    params = {}
    for idx, (out_f, in_f) in enumerate(dims):
        key, kw, kb = jax.random.split(key, 3)
        bound = 1.0 / jnp.sqrt(in_f)
        w_pt = jax.random.uniform(kw, (out_f, in_f), jnp.float32, -bound, bound)
        b_pt = jax.random.uniform(kb, (out_f,), jnp.float32, -bound, bound)
        params[f"w{idx}"] = jnp.transpose(w_pt)          # [in, out]
        params[f"b{idx}"] = b_pt.reshape(1, out_f)       # [1, out]
    return params


def prepare_params(params):
    """One-time padding + bf16 cast of the weights for the kernel.

    Call once and cache the result (removes per-forward cast/pad XLA ops).
    Zero padding of H/H4 is exact: padded h0/h1 columns are ReLU(0)=0 and the
    matching padded w1/w2 rows are zero, so they contribute nothing.
    """
    w0, b0 = params["w0"], params["b0"]      # (F, H),  (1, H)
    w1, b1 = params["w1"], params["b1"]      # (H, H4), (1, H4)
    w2, b2 = params["w2"], params["b2"]      # (H4, O), (1, O)
    F, H = w0.shape
    H4 = w1.shape[1]
    O = w2.shape[1]
    H_p = _round_up(H, 128)
    H4_p = _round_up(H4, 128)
    O_r = _round_up(O, 8)                    # sublane-aligned output rows

    return {
        "F": F, "H": H_p, "H4": H4_p, "O": O, "O_r": O_r,
        "w0": jnp.pad(w0, ((0, 0), (0, H_p - H))).astype(jnp.bfloat16),
        "b0": jnp.pad(b0, ((0, 0), (0, H_p - H))).astype(jnp.float32),
        "w1": jnp.pad(w1, ((0, H_p - H), (0, H4_p - H4))).astype(jnp.bfloat16),
        "b1": jnp.pad(b1, ((0, 0), (0, H4_p - H4))).astype(jnp.float32),
        # Layer-2 weight kept in [out, in] ([O_r, H4_p]) layout for the
        # transposed (lane-dense) output store.
        "w2t": jnp.pad(jnp.transpose(w2),
                       ((0, O_r - O), (0, H4_p - H4))).astype(jnp.bfloat16),
        "b2": jnp.pad(jnp.transpose(b2),
                      ((0, O_r - O), (0, 0))).astype(jnp.float32),
    }


# --------------------------------------------------------------------------- #
# Tiling / VMEM sizing
# --------------------------------------------------------------------------- #
def _choose_tiling(B, tile_b_max=1024):
    """Batch tile: multiple of 128, divides the padded batch, >=2 grid steps
    when possible (v7x dual-TC), as large as allowed otherwise (single-TC)."""
    B_pad = _round_up(B, 128)
    hi = max(128, min(_round_up(tile_b_max, 128), B_pad))
    candidates = [t for t in range(128, hi + 1, 128) if B_pad % t == 0]
    multi = [t for t in candidates if B_pad // t >= 2]
    tile_b = max(multi) if multi else max(candidates)
    return B_pad, tile_b


def _vmem_budget_bytes(tile_b, F, H, H4, O_r):
    bf16, f32 = 2, 4
    x_bytes = 2 * tile_b * F * f32                  # double-buffered f32 x tile
    w_bytes = (F * H + H * H4 + O_r * H4) * bf16    # resident, single-buffered
    b_bytes = (H + H4 + O_r) * f32
    out_bytes = 2 * O_r * tile_b * f32              # double-buffered out tile
    act_bytes = tile_b * (H + H4) * (f32 + bf16)    # h0/h1 f32 + bf16 copies
    return x_bytes + w_bytes + b_bytes + out_bytes + act_bytes


def _vmem_limit_bytes(need_bytes):
    mib = 1 << 20
    try:
        cap = pltpu.get_tpu_info().vmem_capacity_bytes
    except Exception:
        cap = 64 * mib  # conservative fallback (v7x-sized)
    # Headroom for compiler scratch / IO buffers:
    #   64 MiB parts (v7x)       -> ~48 MiB ceiling
    #   128 MiB parts (v5e/v6e)  -> ~100 MiB ceiling
    ceiling = max(32 * mib, min(cap - 16 * mib, int(cap * 0.8)))
    return int(min(max(2 * need_bytes, 32 * mib), ceiling))


# --------------------------------------------------------------------------- #
# Forward wrapper
# --------------------------------------------------------------------------- #
def mlp_forward(x, prep, *, tile_b_max=1024):
    """x: [B, F] float32. prep: output of prepare_params (cached bf16 weights)."""
    B, F = x.shape
    assert F == prep["F"], (F, prep["F"])
    H, H4, O, O_r = prep["H"], prep["H4"], prep["O"], prep["O_r"]

    B_pad, tile_b = _choose_tiling(B, tile_b_max)
    if B_pad != B:
        x = jnp.pad(x, ((0, B_pad - B), (0, 0)))
    grid = (B_pad // tile_b,)

    # Resident (constant index_map) operands -> single buffer, no re-DMA.
    resident = dict(pipeline_mode=pl.Buffered(1))

    vmem_limit = _vmem_limit_bytes(_vmem_budget_bytes(tile_b, F, H, H4, O_r))

    cost = pl.CostEstimate(
        flops=2 * B_pad * (F * H + H * H4 + H4 * O_r),
        transcendentals=B_pad * O_r,
        bytes_accessed=(B_pad * F * 4
                        + (F * H + H * H4 + H4 * O_r) * 2
                        + (H + H4 + O_r) * 4
                        + B_pad * O_r * 4),
    )

    out_t = pl.pallas_call(
        mlp_kernel,
        out_shape=jax.ShapeDtypeStruct((O_r, B_pad), jnp.float32),
        grid_spec=pl.GridSpec(
            grid=grid,
            in_specs=[
                pl.BlockSpec((tile_b, F), lambda i: (i, 0)),              # x (f32)
                pl.BlockSpec((F, H), lambda i: (0, 0), **resident),       # w0
                pl.BlockSpec((1, H), lambda i: (0, 0), **resident),       # b0
                pl.BlockSpec((H, H4), lambda i: (0, 0), **resident),      # w1
                pl.BlockSpec((1, H4), lambda i: (0, 0), **resident),      # b1
                pl.BlockSpec((O_r, H4), lambda i: (0, 0), **resident),    # w2^T
                pl.BlockSpec((O_r, 1), lambda i: (0, 0), **resident),     # b2
            ],
            out_specs=pl.BlockSpec((O_r, tile_b), lambda i: (0, i)),
        ),
        compiler_params=pltpu.CompilerParams(
            dimension_semantics=("parallel",),
            vmem_limit_bytes=vmem_limit,
        ),
        cost_estimate=cost,
    )(x, prep["w0"], prep["b0"], prep["w1"], prep["b1"], prep["w2t"], prep["b2"])

    # (O_r, B_pad) transposed/padded slab -> [B, O]
    return jnp.transpose(out_t[:O, :B])


def mlp_reference(x, params):
    h0 = jnp.maximum(x @ params["w0"] + params["b0"], 0.0)
    h1 = jnp.maximum(h0 @ params["w1"] + params["b1"], 0.0)
    return jax.nn.sigmoid(h1 @ params["w2"] + params["b2"])


if __name__ == "__main__":
    # Small shapes consistent with the module; tile_b=128 -> 2 grid steps so
    # both TensorCores on v7x get work.
    B = 256          # batch
    INPUT_SIZE = 64  # input features
    HIDDEN = 32      # hidden_size (constructor arg; default 512 shrunk for test)
    OUTPUT = 1       # output_size

    key = jax.random.PRNGKey(0)
    key, kx = jax.random.split(key)
    x = jax.random.normal(kx, (B, INPUT_SIZE), dtype=jnp.float32)

    params = init_params(key, INPUT_SIZE, HIDDEN, OUTPUT)
    prep = prepare_params(params)   # one-time bf16 cast + padding (cache this)

    out = mlp_forward(x, prep)
    out = jax.block_until_ready(out)

    ref = mlp_reference(x, params)
    assert out.shape == (B, OUTPUT), out.shape
    # bf16 MXU operands -> loosen tolerance vs the f32 reference.
    assert jnp.allclose(out, ref, atol=2e-2, rtol=2e-2), (out, ref)

    print("KERNEL_OK")
</pallas_src>

<mosaic_0001>
module attributes {stable_mosaic.version = 11 : i64} {
  func.func @mlp_kernel(%arg0: i32, %arg1: memref<128x64xf32, #tpu.memory_space<vmem>>, %arg2: memref<64x128xbf16, #tpu.memory_space<vmem>>, %arg3: memref<1x128xf32, #tpu.memory_space<vmem>>, %arg4: memref<128x128xbf16, #tpu.memory_space<vmem>>, %arg5: memref<1x128xf32, #tpu.memory_space<vmem>>, %arg6: memref<8x128xbf16, #tpu.memory_space<vmem>>, %arg7: memref<8x1xf32, #tpu.memory_space<vmem>>, %arg8: memref<8x128xf32, #tpu.memory_space<vmem>>) attributes {dimension_semantics = [#tpu.dimension_semantics<parallel>], iteration_bounds = array<i64: 2>, scalar_prefetch = 0 : i64, scratch_operands = 0 : i64, tpu.core_type = #tpu.core_type<tc>, window_params = [{transform_indices = @transform_0, window_bounds = array<i64: 128, 64>}, {pipeline_mode = #tpu.pipeline_mode<synchronous>, transform_indices = @transform_1, window_bounds = array<i64: 64, 128>}, {pipeline_mode = #tpu.pipeline_mode<synchronous>, transform_indices = @transform_2, window_bounds = array<i64: 1, 128>}, {pipeline_mode = #tpu.pipeline_mode<synchronous>, transform_indices = @transform_3, window_bounds = array<i64: 128, 128>}, {pipeline_mode = #tpu.pipeline_mode<synchronous>, transform_indices = @transform_4, window_bounds = array<i64: 1, 128>}, {pipeline_mode = #tpu.pipeline_mode<synchronous>, transform_indices = @transform_5, window_bounds = array<i64: 8, 128>}, {pipeline_mode = #tpu.pipeline_mode<synchronous>, transform_indices = @transform_6, window_bounds = array<i64: 8, 1>}, {transform_indices = @transform_7, window_bounds = array<i64: 8, 128>}]} {
    %c0 = arith.constant 0 : index
    %c0_0 = arith.constant 0 : index
    %0 = vector.load %arg1[%c0, %c0_0] : memref<128x64xf32, #tpu.memory_space<vmem>>, vector<128x64xf32>
    %1 = arith.truncf %0 : vector<128x64xf32> to vector<128x64xbf16>
    %c0_1 = arith.constant 0 : index
    %c0_2 = arith.constant 0 : index
    %2 = vector.load %arg2[%c0_1, %c0_2] : memref<64x128xbf16, #tpu.memory_space<vmem>>, vector<64x128xbf16>
    %cst = arith.constant dense<0.000000e+00> : vector<128x128xf32>
    %3 = tpu.matmul %1, %2, %cst {dimension_numbers = #tpu.dot_dimension_numbers<[1], [0], [0], [1], [0, 0, 1, 1], [], []>} : vector<128x64xbf16>, vector<64x128xbf16>, vector<128x128xf32> -> vector<128x128xf32>
    %c0_3 = arith.constant 0 : index
    %c0_4 = arith.constant 0 : index
    %4 = vector.load %arg3[%c0_3, %c0_4] : memref<1x128xf32, #tpu.memory_space<vmem>>, vector<1x128xf32>
    %5 = vector.broadcast %4 : vector<1x128xf32> to vector<128x128xf32>
    %6 = arith.addf %3, %5 : vector<128x128xf32>
    %cst_5 = arith.constant 0.000000e+00 : f32
    %7 = vector.broadcast %cst_5 : f32 to vector<128x128xf32>
    %8 = arith.maximumf %6, %7 : vector<128x128xf32>
    %9 = arith.truncf %8 : vector<128x128xf32> to vector<128x128xbf16>
    %c0_6 = arith.constant 0 : index
    %c0_7 = arith.constant 0 : index
    %10 = vector.load %arg4[%c0_6, %c0_7] : memref<128x128xbf16, #tpu.memory_space<vmem>>, vector<128x128xbf16>
    %cst_8 = arith.constant dense<0.000000e+00> : vector<128x128xf32>
    %11 = tpu.matmul %9, %10, %cst_8 {dimension_numbers = #tpu.dot_dimension_numbers<[1], [0], [0], [1], [0, 0, 1, 1], [], []>} : vector<128x128xbf16>, vector<128x128xbf16>, vector<128x128xf32> -> vector<128x128xf32>
    %c0_9 = arith.constant 0 : index
    %c0_10 = arith.constant 0 : index
    %12 = vector.load %arg5[%c0_9, %c0_10] : memref<1x128xf32, #tpu.memory_space<vmem>>, vector<1x128xf32>
    %13 = vector.broadcast %12 : vector<1x128xf32> to vector<128x128xf32>
    %14 = arith.addf %11, %13 : vector<128x128xf32>
    %cst_11 = arith.constant 0.000000e+00 : f32
    %15 = vector.broadcast %cst_11 : f32 to vector<128x128xf32>
    %16 = arith.maximumf %14, %15 : vector<128x128xf32>
    %c0_12 = arith.constant 0 : index
    %c0_13 = arith.constant 0 : index
    %17 = vector.load %arg6[%c0_12, %c0_13] : memref<8x128xbf16, #tpu.memory_space<vmem>>, vector<8x128xbf16>
    %18 = arith.truncf %16 : vector<128x128xf32> to vector<128x128xbf16>
    %cst_14 = arith.constant dense<0.000000e+00> : vector<8x128xf32>
    %19 = tpu.matmul %17, %18, %cst_14 {dimension_numbers = #tpu.dot_dimension_numbers<[1], [1], [0], [0], [0, 0, 1, 0], [], []>} : vector<8x128xbf16>, vector<128x128xbf16>, vector<8x128xf32> -> vector<8x128xf32>
    %c0_15 = arith.constant 0 : index
    %c0_16 = arith.constant 0 : index
    %20 = vector.load %arg7[%c0_15, %c0_16] : memref<8x1xf32, #tpu.memory_space<vmem>>, vector<8x1xf32>
    %21 = vector.broadcast %20 : vector<8x1xf32> to vector<8x128xf32>
    %22 = arith.addf %19, %21 : vector<8x128xf32>
    %23 = arith.negf %22 : vector<8x128xf32>
    %24 = math.exp %23 : vector<8x128xf32>
    %cst_17 = arith.constant 1.000000e+00 : f32
    %25 = vector.broadcast %cst_17 : f32 to vector<8x128xf32>
    %26 = arith.addf %25, %24 : vector<8x128xf32>
    %27 = arith.divf %25, %26 : vector<8x128xf32>
    %c0_18 = arith.constant 0 : index
    %c0_19 = arith.constant 0 : index
    %28 = vector.load %arg8[%c0_18, %c0_19] : memref<8x128xf32, #tpu.memory_space<vmem>>, vector<8x128xf32>
    tpu.vector_store %arg8[%c0_18, %c0_19], %27 {strides = array<i32>} : memref<8x128xf32, #tpu.memory_space<vmem>>, vector<8x128xf32>,
    return
  }
  func.func @transform_0(%arg0: i32) -> (i32, i32) {
    %c0_i32 = arith.constant 0 : i32
    %c0_i32_0 = arith.constant 0 : i32
    return %arg0, %c0_i32 : i32, i32
  }
  func.func @transform_1(%arg0: i32) -> (i32, i32) {
    %c0_i32 = arith.constant 0 : i32
    %c0_i32_0 = arith.constant 0 : i32
    %c0_i32_1 = arith.constant 0 : i32
    return %c0_i32, %c0_i32_0 : i32, i32
  }
  func.func @transform_2(%arg0: i32) -> (i32, i32) {
    %c0_i32 = arith.constant 0 : i32
    %c0_i32_0 = arith.constant 0 : i32
    %c0_i32_1 = arith.constant 0 : i32
    return %c0_i32, %c0_i32_0 : i32, i32
  }
  func.func @transform_3(%arg0: i32) -> (i32, i32) {
    %c0_i32 = arith.constant 0 : i32
    %c0_i32_0 = arith.constant 0 : i32
    %c0_i32_1 = arith.constant 0 : i32
    return %c0_i32, %c0_i32_0 : i32, i32
  }
  func.func @transform_4(%arg0: i32) -> (i32, i32) {
    %c0_i32 = arith.constant 0 : i32
    %c0_i32_0 = arith.constant 0 : i32
    %c0_i32_1 = arith.constant 0 : i32
    return %c0_i32, %c0_i32_0 : i32, i32
  }
  func.func @transform_5(%arg0: i32) -> (i32, i32) {
    %c0_i32 = arith.constant 0 : i32
    %c0_i32_0 = arith.constant 0 : i32
    %c0_i32_1 = arith.constant 0 : i32
    return %c0_i32, %c0_i32_0 : i32, i32
  }
  func.func @transform_6(%arg0: i32) -> (i32, i32) {
    %c0_i32 = arith.constant 0 : i32
    %c0_i32_0 = arith.constant 0 : i32
    %c0_i32_1 = arith.constant 0 : i32
    return %c0_i32, %c0_i32_0 : i32, i32
  }
  func.func @transform_7(%arg0: i32) -> (i32, i32) {
    %c0_i32 = arith.constant 0 : i32
    %c0_i32_0 = arith.constant 0 : i32
    return %c0_i32, %arg0 : i32, i32
  }
}

</mosaic_0001>

<llo_original>
// kernel: tpu_custom_call.1
$region0: #{tpu_custom_call.1}
  #allocation0 [shape = 'u32[]', space=smem, size = 0x4, offset = 0x4, fixed_abs, tag = 'smem constant byte address 0x4 - core index']
  #allocation1 [shape = 'u32[72,128]{1,0:T(1,128)}', space=vmem, size = 0x9000, scoped, tag = 'internal scratch']
  %s0 = inlined_call_operand.vmem [shape: f32[256,64], index: 0, kind: input, shape index: {}]
  %s1 = inlined_call_operand.vmem [shape: bf16[64,128], index: 1, kind: input, shape index: {}]
  %s2 = inlined_call_operand.vmem [shape: f32[1,128], index: 2, kind: input, shape index: {}]
  %s3 = inlined_call_operand.vmem [shape: bf16[128,128], index: 3, kind: input, shape index: {}]
  %s4 = inlined_call_operand.vmem [shape: f32[1,128], index: 4, kind: input, shape index: {}]
  %s5 = inlined_call_operand.vmem [shape: bf16[8,128], index: 5, kind: input, shape index: {}]
  %s6 = inlined_call_operand.vmem [shape: f32[8,1], index: 6, kind: input, shape index: {}]
  %s7 = inlined_call_operand.hbm [shape: f32[8,256], index: 7, kind: output, shape index: {}]
  %s8 = sld [smem:[#allocation0]]
  $region61: #{tpu_custom_call.1} parent=0
    _
  %s10 = ssub.s32 1, %s8
  %s11 = scalar_select 0, %s10, %s8
  $region1: #{tpu_custom_call.1} parent=0
    #allocation2 [shape = 'u8[8192]{0}', space=vmem, size = 0x2000, scoped, tag = 'output window, operand 0']
    #allocation3 [shape = 's32[2]{0}', space=sflag, size = 0x8, scoped, tag = 'scoped memory for tpu_custom_call.1']
    %12 = vsyncpa [#allocation3], 0
    %s13 = scalar_lea.sflag [#allocation3], 1
    %14 = vsyncpa %s13, 0
    loop: start=0, step=1, limit=4
    $region2: #{tpu_custom_call.1} parent=1 // loop_pre_header
      _
    $region3: #{tpu_custom_call.1} parent=1 // loop_header
      %s16 = sphi 0, %s20
      %p17 = scmp.ge.s32.totalorder %s16, 4
      %s26 = sphi 0, %s28
      %s29 = sphi 0, %s26
      %s30 = sphi 0, %s29
      %s46 = sphi 0, %s30
      %s50 = sphi 0, %s50
      %s52 = sphi 0, %s50
      %s53 = sphi 0, %s52
      %s67 = sphi 0, %s53
      %s71 = sphi 0, %s71
      %s73 = sphi 0, %s71
      %s74 = sphi 0, %s73
      %s88 = sphi 0, %s74
      %s92 = sphi 0, %s92
      %s94 = sphi 0, %s92
      %s95 = sphi 0, %s94
      %s109 = sphi 0, %s95
      %s113 = sphi 0, %s113
      %s115 = sphi 0, %s113
      %s116 = sphi 0, %s115
      %s130 = sphi 0, %s116
      %s134 = sphi 0, %s134
      %s136 = sphi 0, %s134
      %s137 = sphi 0, %s136
      %s151 = sphi 0, %s137
      %s155 = sphi 0, %s155
      %s157 = sphi 0, %s155
      %s158 = sphi 0, %s157
      %s172 = sphi 0, %s158
      %s178 = sphi 0, %s180
      %s181 = sphi 0, %s178
      %s182 = sphi 0, %s181
      %s198 = sphi 0, %s182
    $region4: #{tpu_custom_call.1} parent=1 // loop_header_branch
      %19 = sbr.rel (%p17) target = $region8
    $region5: #{tpu_custom_call.1} parent=1 // loop_body
      %s21 = ssub.s32 %s16, 1
      %s22 = ssub.s32 %s16, 2
      %s23 = sadd.s32 %s16, 1
      %s24 = ssub.s32 %s16, %s23
      %p25 = scmp.eq.s32.totalorder %s24, 0
      %s27 = sadd.s32 %s26, 1
      %s28 = scalar_select %p25, %s26, %s27
      %p31 = pneg %p25
      %p32 = scmp.eq.s32.totalorder %s16, 1
      %p33 = por %p31, %p32
      %p34 = scmp.ne.s32.totalorder %s26, %s29
      %p35 = scmp.eq.s32.totalorder %s16, 0
      %p36 = por %p34, %p35
      %p37 = scmp.ne.s32.totalorder %s26, %s29
      %p38 = scmp.eq.s32.totalorder %s21, 1
      %p39 = por %p37, %p38
      %p40 = scmp.ne.s32.totalorder %s29, %s30
      %p41 = scmp.eq.s32.totalorder %s21, 0
      %p42 = por %p40, %p41
      %p43 = scmp.ne.s32.totalorder %s29, %s30
      %p44 = scmp.eq.s32.totalorder %s22, 1
      %p45 = por %p43, %p44
      %p47 = scmp.ne.s32.totalorder %s30, %s46
      %p48 = scmp.eq.s32.totalorder %s22, 0
      %p49 = por %p47, %p48
      %s51 = sadd.s32 %s50, 1
      %p54 = scmp.eq.s32.totalorder %s16, 1
      %p55 = scmp.ne.s32.totalorder %s50, %s52
      %p56 = scmp.eq.s32.totalorder %s16, 0
      %p57 = por %p55, %p56
      %p58 = scmp.ne.s32.totalorder %s50, %s52
      %p59 = scmp.eq.s32.totalorder %s21, 1
      %p60 = por %p58, %p59
      %p61 = scmp.ne.s32.totalorder %s52, %s53
      %p62 = scmp.eq.s32.totalorder %s21, 0
      %p63 = por %p61, %p62
      %p64 = scmp.ne.s32.totalorder %s52, %s53
      %p65 = scmp.eq.s32.totalorder %s22, 1
      %p66 = por %p64, %p65
      %p68 = scmp.ne.s32.totalorder %s53, %s67
      %p69 = scmp.eq.s32.totalorder %s22, 0
      %p70 = por %p68, %p69
      %s72 = sadd.s32 %s71, 1
      %p75 = scmp.eq.s32.totalorder %s16, 1
      %p76 = scmp.ne.s32.totalorder %s71, %s73
      %p77 = scmp.eq.s32.totalorder %s16, 0
      %p78 = por %p76, %p77
      %p79 = scmp.ne.s32.totalorder %s71, %s73
      %p80 = scmp.eq.s32.totalorder %s21, 1
      %p81 = por %p79, %p80
      %p82 = scmp.ne.s32.totalorder %s73, %s74
      %p83 = scmp.eq.s32.totalorder %s21, 0
      %p84 = por %p82, %p83
      %p85 = scmp.ne.s32.totalorder %s73, %s74
      %p86 = scmp.eq.s32.totalorder %s22, 1
      %p87 = por %p85, %p86
      %p89 = scmp.ne.s32.totalorder %s74, %s88
      %p90 = scmp.eq.s32.totalorder %s22, 0
      %p91 = por %p89, %p90
      %s93 = sadd.s32 %s92, 1
      %p96 = scmp.eq.s32.totalorder %s16, 1
      %p97 = scmp.ne.s32.totalorder %s92, %s94
      %p98 = scmp.eq.s32.totalorder %s16, 0
      %p99 = por %p97, %p98
      %p100 = scmp.ne.s32.totalorder %s92, %s94
      %p101 = scmp.eq.s32.totalorder %s21, 1
      %p102 = por %p100, %p101
      %p103 = scmp.ne.s32.totalorder %s94, %s95
      %p104 = scmp.eq.s32.totalorder %s21, 0
      %p105 = por %p103, %p104
      %p106 = scmp.ne.s32.totalorder %s94, %s95
      %p107 = scmp.eq.s32.totalorder %s22, 1
      %p108 = por %p106, %p107
      %p110 = scmp.ne.s32.totalorder %s95, %s109
      %p111 = scmp.eq.s32.totalorder %s22, 0
      %p112 = por %p110, %p111
      %s114 = sadd.s32 %s113, 1
      %p117 = scmp.eq.s32.totalorder %s16, 1
      %p118 = scmp.ne.s32.totalorder %s113, %s115
      %p119 = scmp.eq.s32.totalorder %s16, 0
      %p120 = por %p118, %p119
      %p121 = scmp.ne.s32.totalorder %s113, %s115
      %p122 = scmp.eq.s32.totalorder %s21, 1
      %p123 = por %p121, %p122
      %p124 = scmp.ne.s32.totalorder %s115, %s116
      %p125 = scmp.eq.s32.totalorder %s21, 0
      %p126 = por %p124, %p125
      %p127 = scmp.ne.s32.totalorder %s115, %s116
      %p128 = scmp.eq.s32.totalorder %s22, 1
      %p129 = por %p127, %p128
      %p131 = scmp.ne.s32.totalorder %s116, %s130
      %p132 = scmp.eq.s32.totalorder %s22, 0
      %p133 = por %p131, %p132
      %s135 = sadd.s32 %s134, 1
      %p138 = scmp.eq.s32.totalorder %s16, 1
      %p139 = scmp.ne.s32.totalorder %s134, %s136
      %p140 = scmp.eq.s32.totalorder %s16, 0
      %p141 = por %p139, %p140
      %p142 = scmp.ne.s32.totalorder %s134, %s136
      %p143 = scmp.eq.s32.totalorder %s21, 1
      %p144 = por %p142, %p143
      %p145 = scmp.ne.s32.totalorder %s136, %s137
      %p146 = scmp.eq.s32.totalorder %s21, 0
      %p147 = por %p145, %p146
      %p148 = scmp.ne.s32.totalorder %s136, %s137
      %p149 = scmp.eq.s32.totalorder %s22, 1
      %p150 = por %p148, %p149
      %p152 = scmp.ne.s32.totalorder %s137, %s151
      %p153 = scmp.eq.s32.totalorder %s22, 0
      %p154 = por %p152, %p153
      %s156 = sadd.s32 %s155, 1
      %p159 = scmp.eq.s32.totalorder %s16, 1
      %p160 = scmp.ne.s32.totalorder %s155, %s157
      %p161 = scmp.eq.s32.totalorder %s16, 0
      %p162 = por %p160, %p161
      %p163 = scmp.ne.s32.totalorder %s155, %s157
      %p164 = scmp.eq.s32.totalorder %s21, 1
      %p165 = por %p163, %p164
      %p166 = scmp.ne.s32.totalorder %s157, %s158
      %p167 = scmp.eq.s32.totalorder %s21, 0
      %p168 = por %p166, %p167
      %p169 = scmp.ne.s32.totalorder %s157, %s158
      %p170 = scmp.eq.s32.totalorder %s22, 1
      %p171 = por %p169, %p170
      %p173 = scmp.ne.s32.totalorder %s158, %s172
      %p174 = scmp.eq.s32.totalorder %s22, 0
      %p175 = por %p173, %p174
      %s176 = ssub.s32 %s16, %s23
      %p177 = scmp.eq.s32.totalorder %s176, 0
      %s179 = sadd.s32 %s178, 1
      %s180 = scalar_select %p177, %s178, %s179
      %p183 = pneg %p177
      %p184 = scmp.eq.s32.totalorder %s16, 1
      %p185 = por %p183, %p184
      %p186 = scmp.ne.s32.totalorder %s178, %s181
      %p187 = scmp.eq.s32.totalorder %s16, 0
      %p188 = por %p186, %p187
      %p189 = scmp.ne.s32.totalorder %s178, %s181
      %p190 = scmp.eq.s32.totalorder %s21, 1
      %p191 = por %p189, %p190
      %p192 = scmp.ne.s32.totalorder %s181, %s182
      %p193 = scmp.eq.s32.totalorder %s21, 0
      %p194 = por %p192, %p193
      %p195 = scmp.ne.s32.totalorder %s181, %s182
      %p196 = scmp.eq.s32.totalorder %s22, 1
      %p197 = por %p195, %p196
      %p199 = scmp.ne.s32.totalorder %s182, %s198
      %p200 = scmp.eq.s32.totalorder %s22, 0
      %p201 = por %p199, %p200
      %p202 = scmp.le.s32.totalorder 1, %s16
      %p203 = scmp.lt.s32.totalorder %s16, 3
      %p204 = pnand %p202, %p203
      %p205 = pneg %p204
      // Predicated region
      $region9: #{tpu_custom_call.1} parent=5 // pred_check
        _
      $region10: #{tpu_custom_call.1} parent=5 // pred_check_branch
        %207 = sbr.rel (%p204) target = $region12
      $region11: #{tpu_custom_call.1} parent=5 // pred_region
        %s208 = ssub.s32 %s16, 1
        // Predicated region
        $region13: #{tpu_custom_call.1} parent=11 // pred_check
          %p209 = pneg %p63
        $region14: #{tpu_custom_call.1} parent=11 // pred_check_branch
          %211 = sbr.rel (%p209) target = $region16
        $region15: #{tpu_custom_call.1} parent=11 // pred_region
          _
        $region16: #{tpu_custom_call.1} parent=11 // pred_fallthru
          _
        // Predicated region
        $region17: #{tpu_custom_call.1} parent=11 // pred_check
          %p212 = pneg %p84
        $region18: #{tpu_custom_call.1} parent=11 // pred_check_branch
          %214 = sbr.rel (%p212) target = $region20
        $region19: #{tpu_custom_call.1} parent=11 // pred_region
          _
        $region20: #{tpu_custom_call.1} parent=11 // pred_fallthru
          _
        // Predicated region
        $region21: #{tpu_custom_call.1} parent=11 // pred_check
          %p215 = pneg %p105
        $region22: #{tpu_custom_call.1} parent=11 // pred_check_branch
          %217 = sbr.rel (%p215) target = $region24
        $region23: #{tpu_custom_call.1} parent=11 // pred_region
          _
        $region24: #{tpu_custom_call.1} parent=11 // pred_fallthru
          _
        // Predicated region
        $region25: #{tpu_custom_call.1} parent=11 // pred_check
          %p218 = pneg %p126
        $region26: #{tpu_custom_call.1} parent=11 // pred_check_branch
          %220 = sbr.rel (%p218) target = $region28
        $region27: #{tpu_custom_call.1} parent=11 // pred_region
          _
        $region28: #{tpu_custom_call.1} parent=11 // pred_fallthru
          _
        // Predicated region
        $region29: #{tpu_custom_call.1} parent=11 // pred_check
          %p221 = pneg %p147
        $region30: #{tpu_custom_call.1} parent=11 // pred_check_branch
          %223 = sbr.rel (%p221) target = $region32
        $region31: #{tpu_custom_call.1} parent=11 // pred_region
          _
        $region32: #{tpu_custom_call.1} parent=11 // pred_fallthru
          _
        // Predicated region
        $region33: #{tpu_custom_call.1} parent=11 // pred_check
          %p224 = pneg %p168
        $region34: #{tpu_custom_call.1} parent=11 // pred_check_branch
          %226 = sbr.rel (%p224) target = $region36
        $region35: #{tpu_custom_call.1} parent=11 // pred_region
          _
        $region36: #{tpu_custom_call.1} parent=11 // pred_fallthru
          _
      $region12: #{tpu_custom_call.1} parent=5 // pred_fallthru
        _
      %p227 = scmp.lt.s32.totalorder %s16, 2
      // Predicated region
      $region37: #{tpu_custom_call.1} parent=5 // pred_check
        %p228 = pneg %p227
      $region38: #{tpu_custom_call.1} parent=5 // pred_check_branch
        %230 = sbr.rel (%p228) target = $region40
      $region39: #{tpu_custom_call.1} parent=5 // pred_region
        // Predicated region
        $region41: #{tpu_custom_call.1} parent=39 // pred_check
          %p231 = pneg %p36
        $region42: #{tpu_custom_call.1} parent=39 // pred_check_branch
          %233 = sbr.rel (%p231) target = $region44
        $region43: #{tpu_custom_call.1} parent=39 // pred_region
          %s234 = smul.u32 16, %s16
          %p235 = scmp.lt.s32.totalorder %s234, 31
          %s236 = scalar_select %p235, %s234, 31
          %s237 = smul.addr %s236, 8
          %s238 = scalar_lea.vmem %s0, %s237
          %s239 = smul.u32 16, %s16
        $region44: #{tpu_custom_call.1} parent=39 // pred_fallthru
          _
      $region40: #{tpu_custom_call.1} parent=5 // pred_fallthru
        _
      %p240 = scmp.le.s32.totalorder 1, %s16
      %p241 = scmp.lt.s32.totalorder %s16, 3
      %p242 = pnand %p240, %p241
      %p243 = pneg %p242
      // Predicated region
      $region45: #{tpu_custom_call.1} parent=5 // pred_check
        _
      $region46: #{tpu_custom_call.1} parent=5 // pred_check_branch
        %245 = sbr.rel (%p242) target = $region48
      $region47: #{tpu_custom_call.1} parent=5 // pred_region
        %s246 = ssub.s32 %s16, 1
        %s247 = smul.u32 16, %s21
        %p248 = scmp.lt.s32.totalorder %s247, 31
        %s249 = scalar_select %p248, %s247, 31
        %s250 = smul.addr %s249, 8
        %s251 = scalar_lea.vmem %s0, %s250
        %p252 = pneg %p42
        %p253 = pneg %p39
        %p254 = pneg %p63
        %p255 = pneg %p60
        %p256 = pneg %p84
        %p257 = pneg %p81
        %p258 = pneg %p105
        %p259 = pneg %p102
        %p260 = pneg %p126
        %p261 = pneg %p123
        %p262 = pneg %p147
        %p263 = pneg %p144
        %p264 = pneg %p168
        %p265 = pneg %p165
        %p266 = pneg %p194
        %p267 = pneg %p191
        %s268 = sand.u32 %s181, 1
        %s269 = scalar_lea.sflag [#allocation3], %s268
        %s270 = sand.u32 %s181, 1
        %s271 = smul.addr %s270, 8
        %s272 = scalar_lea.vmem [#allocation2], %s271
        %s273 = smul.u32 16, %s21
        %p274 = scmp.lt.s32.totalorder %s273, 31
        %s275 = scalar_select %p274, %s273, 31
        %s276 = smul.addr %s275, 8
        %s277 = scalar_lea.vmem %s0, %s276
        %s278 = smul.u32 16, %s21
        %v280 = vld [vmem:[%s277] sm:$0xff]
        %v281 = vld [vmem:[%s277 + $0x8] sm:$0xff]
        %v282 = vld [vmem:[%s277 + $0x10] sm:$0xff]
        %v283 = vld [vmem:[%s277 + $0x18] sm:$0xff]
        %v284 = vld [vmem:[%s277 + $0x20] sm:$0xff]
        %v285 = vld [vmem:[%s277 + $0x28] sm:$0xff]
        %v286 = vld [vmem:[%s277 + $0x30] sm:$0xff]
        %v287 = vld [vmem:[%s277 + $0x38] sm:$0xff]
        %v288 = vld [vmem:[%s277 + $0x40] sm:$0xff]
        %v289 = vld [vmem:[%s277 + $0x48] sm:$0xff]
        %v290 = vld [vmem:[%s277 + $0x50] sm:$0xff]
        %v291 = vld [vmem:[%s277 + $0x58] sm:$0xff]
        %v292 = vld [vmem:[%s277 + $0x60] sm:$0xff]
        %v293 = vld [vmem:[%s277 + $0x68] sm:$0xff]
        %v294 = vld [vmem:[%s277 + $0x70] sm:$0xff]
        %v295 = vld [vmem:[%s277 + $0x78] sm:$0xff]
        %v296 = vpack.c.bf16 %v281, %v280
        %v297 = vpack.c.bf16 %v283, %v282
        %v298 = vpack.c.bf16 %v285, %v284
        %v299 = vpack.c.bf16 %v287, %v286
        %v300 = vpack.c.bf16 %v289, %v288
        %v301 = vpack.c.bf16 %v291, %v290
        %v302 = vpack.c.bf16 %v293, %v292
        %v303 = vpack.c.bf16 %v295, %v294
        %v304 = vld [vmem:[%s1] sm:$0xf]
        %v305 = vld [vmem:[%s1 + $0x4] sm:$0xf]
        %v306 = vld [vmem:[%s1 + $0x8] sm:$0xf]
        %v307 = vld [vmem:[%s1 + $0xc] sm:$0xf]
        %v308 = vld [vmem:[%s1 + $0x10] sm:$0xf]
        %v309 = vld [vmem:[%s1 + $0x14] sm:$0xf]
        %v310 = vld [vmem:[%s1 + $0x18] sm:$0xf]
        %v311 = vld [vmem:[%s1 + $0x1c] sm:$0xf]
        %v312 = vld [vmem:[%s2] sm:$0x1]
        %v314 = vperm.slane %v312, 0
        %v324 = vunpack.c.l.b16 %v304
        %v325 = vunpack.c.l.b16 %v305
        %v326 = vunpack.c.l.b16 %v306
        %v327 = vunpack.c.l.b16 %v307
        %v328 = vunpack.c.l.b16 %v308
        %v329 = vunpack.c.l.b16 %v309
        %v330 = vunpack.c.l.b16 %v310
        %v331 = vunpack.c.l.b16 %v311
        %v332 = vpack.c.b16 %v325, %v324
        %v333 = vpack.c.b16 %v327, %v326
        %v334 = vpack.c.b16 %v329, %v328
        %v335 = vpack.c.b16 %v331, %v330
        %vm340 = vcmask 523264
        %v342 = vsel %vm340, %v296, 0
        %v345 = vsel %vm340, %v297, 0
        %v348 = vsel %vm340, %v298, 0
        %v351 = vsel %vm340, %v299, 0
        %v354 = vsel %vm340, %v300, 0
        %v357 = vsel %vm340, %v301, 0
        %v360 = vsel %vm340, %v302, 0
        %v363 = vsel %vm340, %v303, 0
        %365 = vmatpush.bf16.msra.mxu0 0
        %366 = vmatpush.bf16.msra.mxu0 0
        %367 = vmatpush.bf16.msra.mxu0 0
        %368 = vmatpush.bf16.msra.mxu0 0
        %369 = vmatpush.bf16.msra.mxu0 %v335
        %370 = vmatpush.bf16.msra.mxu0 %v334
        %371 = vmatpush.bf16.msra.mxu0 %v333
        %372 = vmatpush.bf16.msra.mxu0 %v332
        %373 = vmatmul.bf16.gmra.mxu0 %v342
        %v374 = vpop.f32.mrf.mxu0
        %v375 = vadd.f32 %v314, %v374
        %v376 = vpop.f32.mrf.mxu0
        %v377 = vadd.f32 %v314, %v376
        %378 = vmatmul.bf16.gmra.mxu0 %v345
        %v379 = vpop.f32.mrf.mxu0
        %v380 = vadd.f32 %v314, %v379
        %v381 = vpop.f32.mrf.mxu0
        %v382 = vadd.f32 %v314, %v381
        %383 = vmatmul.bf16.gmra.mxu0 %v348
        %v384 = vpop.f32.mrf.mxu0
        %v385 = vadd.f32 %v314, %v384
        %v386 = vpop.f32.mrf.mxu0
        %v387 = vadd.f32 %v314, %v386
        %388 = vmatmul.bf16.gmra.mxu0 %v351
        %v389 = vpop.f32.mrf.mxu0
        %v390 = vadd.f32 %v314, %v389
        %v391 = vpop.f32.mrf.mxu0
        %v392 = vadd.f32 %v314, %v391
        %393 = vmatmul.bf16.gmra.mxu0 %v354
        %v394 = vpop.f32.mrf.mxu0
        %v395 = vadd.f32 %v314, %v394
        %v396 = vpop.f32.mrf.mxu0
        %v397 = vadd.f32 %v314, %v396
        %398 = vmatmul.bf16.gmra.mxu0 %v357
        %v399 = vpop.f32.mrf.mxu0
        %v400 = vadd.f32 %v314, %v399
        %v401 = vpop.f32.mrf.mxu0
        %v402 = vadd.f32 %v314, %v401
        %403 = vmatmul.bf16.gmra.mxu0 %v360
        %v404 = vpop.f32.mrf.mxu0
        %v405 = vadd.f32 %v314, %v404
        %v406 = vpop.f32.mrf.mxu0
        %v407 = vadd.f32 %v314, %v406
        %408 = vmatmul.bf16.gmra.mxu0 %v363
        %v409 = vpop.f32.mrf.mxu0
        %v410 = vadd.f32 %v314, %v409
        %v411 = vpop.f32.mrf.mxu0
        %v412 = vadd.f32 %v314, %v411
        %413 = vdwg.mxu0
        %v414 = vmax.f32 %v375, 0.0
        %v415 = vmax.f32 %v377, 0.0
        %v416 = vmax.f32 %v380, 0.0
        %v417 = vmax.f32 %v382, 0.0
        %v418 = vmax.f32 %v385, 0.0
        %v419 = vmax.f32 %v387, 0.0
        %v420 = vmax.f32 %v390, 0.0
        %v421 = vmax.f32 %v392, 0.0
        %v422 = vmax.f32 %v395, 0.0
        %v423 = vmax.f32 %v397, 0.0
        %v424 = vmax.f32 %v400, 0.0
        %v425 = vmax.f32 %v402, 0.0
        %v426 = vmax.f32 %v405, 0.0
        %v427 = vmax.f32 %v407, 0.0
        %v428 = vmax.f32 %v410, 0.0
        %v429 = vmax.f32 %v412, 0.0
        %v430 = vpack.c.bf16 %v415, %v414
        %v431 = vpack.c.bf16 %v417, %v416
        %v432 = vpack.c.bf16 %v419, %v418
        %v433 = vpack.c.bf16 %v421, %v420
        %v434 = vpack.c.bf16 %v423, %v422
        %v435 = vpack.c.bf16 %v425, %v424
        %v436 = vpack.c.bf16 %v427, %v426
        %v437 = vpack.c.bf16 %v429, %v428
        %v438 = vld [vmem:[%s3] sm:$0xf]
        %v439 = vld [vmem:[%s3 + $0x4] sm:$0xf]
        %v440 = vld [vmem:[%s3 + $0x8] sm:$0xf]
        %v441 = vld [vmem:[%s3 + $0xc] sm:$0xf]
        %v442 = vld [vmem:[%s3 + $0x10] sm:$0xf]
        %v443 = vld [vmem:[%s3 + $0x14] sm:$0xf]
        %v444 = vld [vmem:[%s3 + $0x18] sm:$0xf]
        %v445 = vld [vmem:[%s3 + $0x1c] sm:$0xf]
        %v446 = vld [vmem:[%s3 + $0x20] sm:$0xf]
        %v447 = vld [vmem:[%s3 + $0x24] sm:$0xf]
        %v448 = vld [vmem:[%s3 + $0x28] sm:$0xf]
        %v449 = vld [vmem:[%s3 + $0x2c] sm:$0xf]
        %v450 = vld [vmem:[%s3 + $0x30] sm:$0xf]
        %v451 = vld [vmem:[%s3 + $0x34] sm:$0xf]
        %v452 = vld [vmem:[%s3 + $0x38] sm:$0xf]
        %v453 = vld [vmem:[%s3 + $0x3c] sm:$0xf]
        %v454 = vld [vmem:[%s4] sm:$0x1]
        %v456 = vperm.slane %v454, 0
        %v474 = vunpack.c.l.b16 %v438
        %v475 = vunpack.c.l.b16 %v439
        %v476 = vunpack.c.l.b16 %v440
        %v477 = vunpack.c.l.b16 %v441
        %v478 = vunpack.c.l.b16 %v442
        %v479 = vunpack.c.l.b16 %v443
        %v480 = vunpack.c.l.b16 %v444
        %v481 = vunpack.c.l.b16 %v445
        %v482 = vunpack.c.l.b16 %v446
        %v483 = vunpack.c.l.b16 %v447
        %v484 = vunpack.c.l.b16 %v448
        %v485 = vunpack.c.l.b16 %v449
        %v486 = vunpack.c.l.b16 %v450
        %v487 = vunpack.c.l.b16 %v451
        %v488 = vunpack.c.l.b16 %v452
        %v489 = vunpack.c.l.b16 %v453
        %v490 = vpack.c.b16 %v475, %v474
        %v491 = vpack.c.b16 %v477, %v476
        %v492 = vpack.c.b16 %v479, %v478
        %v493 = vpack.c.b16 %v481, %v480
        %v494 = vpack.c.b16 %v483, %v482
        %v495 = vpack.c.b16 %v485, %v484
        %v496 = vpack.c.b16 %v487, %v486
        %v497 = vpack.c.b16 %v489, %v488
        %506 = vmatpush.bf16.msra.mxu0 %v497
        %507 = vmatpush.bf16.msra.mxu0 %v496
        %508 = vmatpush.bf16.msra.mxu0 %v495
        %509 = vmatpush.bf16.msra.mxu0 %v494
        %510 = vmatpush.bf16.msra.mxu0 %v493
        %511 = vmatpush.bf16.msra.mxu0 %v492
        %512 = vmatpush.bf16.msra.mxu0 %v491
        %513 = vmatpush.bf16.msra.mxu0 %v490
        %514 = vmatmul.bf16.gmra.mxu0 %v430
        %v515 = vpop.f32.mrf.mxu0
        %v516 = vadd.f32 %v456, %v515
        %v517 = vpop.f32.mrf.mxu0
        %v518 = vadd.f32 %v456, %v517
        %519 = vmatmul.bf16.gmra.mxu0 %v431
        %v520 = vpop.f32.mrf.mxu0
        %v521 = vadd.f32 %v456, %v520
        %v522 = vpop.f32.mrf.mxu0
        %v523 = vadd.f32 %v456, %v522
        %524 = vmatmul.bf16.gmra.mxu0 %v432
        %v525 = vpop.f32.mrf.mxu0
        %v526 = vadd.f32 %v456, %v525
        %v527 = vpop.f32.mrf.mxu0
        %v528 = vadd.f32 %v456, %v527
        %529 = vmatmul.bf16.gmra.mxu0 %v433
        %v530 = vpop.f32.mrf.mxu0
        %v531 = vadd.f32 %v456, %v530
        %v532 = vpop.f32.mrf.mxu0
        %v533 = vadd.f32 %v456, %v532
        %534 = vmatmul.bf16.gmra.mxu0 %v434
        %v535 = vpop.f32.mrf.mxu0
        %v536 = vadd.f32 %v456, %v535
        %v537 = vpop.f32.mrf.mxu0
        %v538 = vadd.f32 %v456, %v537
        %539 = vmatmul.bf16.gmra.mxu0 %v435
        %v540 = vpop.f32.mrf.mxu0
        %v541 = vadd.f32 %v456, %v540
        %v542 = vpop.f32.mrf.mxu0
        %v543 = vadd.f32 %v456, %v542
        %544 = vmatmul.bf16.gmra.mxu0 %v436
        %v545 = vpop.f32.mrf.mxu0
        %v546 = vadd.f32 %v456, %v545
        %v547 = vpop.f32.mrf.mxu0
        %v548 = vadd.f32 %v456, %v547
        %549 = vmatmul.bf16.gmra.mxu0 %v437
        %v550 = vpop.f32.mrf.mxu0
        %v551 = vadd.f32 %v456, %v550
        %v552 = vpop.f32.mrf.mxu0
        %v553 = vadd.f32 %v456, %v552
        %554 = vdwg.mxu0
        %v555 = vmax.f32 %v516, 0.0
        %v556 = vmax.f32 %v518, 0.0
        %v557 = vmax.f32 %v521, 0.0
        %v558 = vmax.f32 %v523, 0.0
        %v559 = vmax.f32 %v526, 0.0
        %v560 = vmax.f32 %v528, 0.0
        %v561 = vmax.f32 %v531, 0.0
        %v562 = vmax.f32 %v533, 0.0
        %v563 = vmax.f32 %v536, 0.0
        %v564 = vmax.f32 %v538, 0.0
        %v565 = vmax.f32 %v541, 0.0
        %v566 = vmax.f32 %v543, 0.0
        %v567 = vmax.f32 %v546, 0.0
        %v568 = vmax.f32 %v548, 0.0
        %v569 = vmax.f32 %v551, 0.0
        %v570 = vmax.f32 %v553, 0.0
        %v571 = vld [vmem:[%s5] sm:$0xf]
        %v572 = vpack.c.bf16 %v556, %v555
        %v573 = vpack.c.bf16 %v558, %v557
        %v574 = vpack.c.bf16 %v560, %v559
        %v575 = vpack.c.bf16 %v562, %v561
        %v576 = vpack.c.bf16 %v564, %v563
        %v577 = vpack.c.bf16 %v566, %v565
        %v578 = vpack.c.bf16 %v568, %v567
        %v579 = vpack.c.bf16 %v570, %v569
        %v580 = vld [vmem:[%s6] sm:$0xff]
        %582 = vset.pattern.permute.xlu0 0
        %583 = vperm.xlu0 %582, %v580
        %v584 = vpop.permute.xlu0 %583
        %586 = vmatpush.bf16.xpose.msra.mxu0 %v579
        %587 = vmatpush.bf16.xpose.msra.mxu0 %v578
        %588 = vmatpush.bf16.xpose.msra.mxu0 %v577
        %589 = vmatpush.bf16.xpose.msra.mxu0 %v576
        %590 = vmatpush.bf16.xpose.msra.mxu0 %v575
        %591 = vmatpush.bf16.xpose.msra.mxu0 %v574
        %592 = vmatpush.bf16.xpose.msra.mxu0 %v573
        %593 = vmatpush.bf16.xpose.msra.mxu0 %v572
        %594 = vmatmul.bf16.gmra.mxu0 %v571
        %v595 = vpop.f32.mrf.mxu0
        %v596 = vadd.f32 %v584, %v595
        %v597 = vpop.f32.mrf.mxu0
        %598 = vdwg.mxu0
        %v599 = vxor.u32 %v596, 2147483648
        %v600 = vmul.f32 %v599, 1.442695
        %v601 = vpow.pop %v600
        %v602 = vadd.f32 %v601, 1.0
        %v603 = vrcp.pop %v602
        %v604 = vmul.f32 %v602, %v603
        %v605 = vsub.f32 1.0, %v604
        %v606 = vmul.f32 %v603, %v605
        %v607 = vadd.f32 %v603, %v606
        %vm608 = vweird.f32 %v602
        %vm609 = vweird.f32 %v603
        %vm610 = vmor %vm608, %vm609
        %v611 = vsel %vm610, %v603, %v607
        %v612 = vand.u32 2147483647, %v602
        %vm613 = vcmp.eq.f32.partialorder %v612, 8.507059e+37
        %v614 = vand.u32 %v602, 2147483648
        %v615 = vor.u32 1.1754944e-38, %v614
        %v616 = vsel %vm613, %v615, %v611
        %v617 = vmul.f32 1.0, %v616
        %618 = vst [vmem:[%s272] sm:$0xff] %v617
        %s619 = sand.u32 %s181, 1
        %s620 = scalar_lea.sflag [#allocation3], %s619
        %s621 = sand.u32 %s181, 1
        %s622 = smul.addr %s621, 8
        %s623 = scalar_lea.vmem [#allocation2], %s622
        // Predicated region
        $region49: #{tpu_custom_call.1} parent=47 // pred_check
          %p624 = pneg %p191
        $region50: #{tpu_custom_call.1} parent=47 // pred_check_branch
          %626 = sbr.rel (%p624) target = $region52
        $region51: #{tpu_custom_call.1} parent=47 // pred_region
          %628 = vsyncadd %s620, 0
          %s629 = smul.addr %s21, 8
          %s630 = scalar_lea.hbm %s7, %s629
          %s632 = sshll.u32 %s623, 4
          %s633 = int_to_ptr.vmem [resolvable:$true] %s632
          %s634 = sshll.u32 %s630, 4
          %s635 = int_to_ptr.hbm [resolvable:$true] %s634
          %637 = dma.vmem_to_hbm [thread:$0]  %s633, 128, %s635, %s620
        $region52: #{tpu_custom_call.1} parent=47 // pred_fallthru
          _
      $region48: #{tpu_custom_call.1} parent=5 // pred_fallthru
        _
      %p638 = scmp.le.s32.totalorder 2, %s16
      // Predicated region
      $region53: #{tpu_custom_call.1} parent=5 // pred_check
        %p639 = pneg %p638
      $region54: #{tpu_custom_call.1} parent=5 // pred_check_branch
        %641 = sbr.rel (%p639) target = $region56
      $region55: #{tpu_custom_call.1} parent=5 // pred_region
        %s642 = ssub.s32 %s16, 2
        // Predicated region
        $region57: #{tpu_custom_call.1} parent=55 // pred_check
          %p643 = pneg %p197
        $region58: #{tpu_custom_call.1} parent=55 // pred_check_branch
          %645 = sbr.rel (%p643) target = $region60
        $region59: #{tpu_custom_call.1} parent=55 // pred_region
          %s646 = sand.u32 %s182, 1
          %s647 = scalar_lea.sflag [#allocation3], %s646
          %s648 = sand.u32 %s182, 1
          %s649 = smul.addr %s648, 8
          %s650 = scalar_lea.vmem [#allocation2], %s649
          %652 = dma.done %s647, 128
        $region60: #{tpu_custom_call.1} parent=55 // pred_fallthru
          _
      $region56: #{tpu_custom_call.1} parent=5 // pred_fallthru
        _
    $region6: #{tpu_custom_call.1} parent=1 // loop_footer
      %s20 = sadd.s32 1, %s16
    $region7: #{tpu_custom_call.1} parent=1 // loop_footer_branch
      %15 = sbr.rel target = $region3
    $region8: #{tpu_custom_call.1} parent=1 // loop_exit
      _
    %653 = vsyncpa [#allocation3], 1
    %s654 = scalar_lea.sflag [#allocation3], 1
    %655 = vsyncpa %s654, 1

</llo_original>
